<compile_context>
chip_gen: v7x
topology: tpu7x:2x2x1
jax: 0.10.0
libtpu: 0.0.40
codegen_flags: <defaults>
</compile_context>

<pallas_src>
import math

import jax
import jax.numpy as jnp
from jax.experimental import pallas as pl
from jax.experimental.pallas import tpu as pltpu

EPS = 1e-3


def _pearson_kernel(x_ref, y_ref, out_ref):
    """x_ref/y_ref: (TB, N) tile (input dtype). out_ref: (1, TB) f32, lane-dense."""
    x = x_ref[...].astype(jnp.float32)
    y = y_ref[...].astype(jnp.float32)

    # Two-pass centered form (numerically stable), matching the PyTorch module.
    x_mean = jnp.mean(x, axis=-1, keepdims=True)
    y_mean = jnp.mean(y, axis=-1, keepdims=True)
    xc = x - x_mean
    yc = y - y_mean

    cov_xy = jnp.mean(xc * yc, axis=-1)            # (TB,)
    std_x = jnp.sqrt(jnp.mean(xc * xc, axis=-1))   # (TB,)
    std_y = jnp.sqrt(jnp.mean(yc * yc, axis=-1))   # (TB,)

    pearson_r = cov_xy / (std_x * std_y + EPS)
    out_ref[...] = (-pearson_r)[None, :]


def _round_up(v, m):
    return ((v + m - 1) // m) * m


def _choose_batch_tile(b, n, itemsize):
    """Pick a batch-tile size TB and grid length.

    VMEM budget per pipelined step: 2 inputs x 2 pipeline buffers at the input
    dtype plus ~6 f32 tile-sized temporaries inside the body, targeted below
    ~24 MiB so the kernel fits a 32 MiB scoped-VMEM limit on v5e/v6e/v7x.
    """
    budget = 24 * 1024 * 1024
    per_elem = 4 * itemsize + 24
    cap = max(1, budget // (per_elem * max(n, 1)))
    cap = max(128, min(1024, (cap // 128) * 128))   # multiple of 128 when tiled
    if b <= cap:
        return _round_up(max(b, 1), 8), 1           # single tile = full (padded) batch
    # TODO(synk): if N is so large that even a (128, N) tile exceeds VMEM, add a
    # second "arbitrary" grid axis over N with scratch accumulators for the five
    # partial sums (init at k==0, finalize at k==last via pl.when).
    return cap, pl.cdiv(b, cap)


def pearson_correlation_loss(x, y, *, dim=-1, seed=0):
    """Negative Pearson correlation of x vs y along `dim` (PyTorch module parity)."""
    assert x.shape == y.shape, "Input tensors must have the same size"
    out_dtype = x.dtype

    # x = x + randn_like(x) * eps ; y = y + randn_like(y) * eps
    kx, ky = jax.random.split(jax.random.PRNGKey(seed))
    x = x + jax.random.normal(kx, x.shape, dtype=x.dtype) * jnp.asarray(EPS, x.dtype)
    y = y + jax.random.normal(ky, y.shape, dtype=y.dtype) * jnp.asarray(EPS, y.dtype)

    # Move the reduction dim to the lane axis and flatten batch dims.
    x_m = jnp.moveaxis(x, dim, -1)
    y_m = jnp.moveaxis(y, dim, -1)
    batch_shape = x_m.shape[:-1]
    n = x_m.shape[-1]
    b = int(math.prod(batch_shape)) if batch_shape else 1

    x2 = x_m.reshape(b, n)
    y2 = y_m.reshape(b, n)

    tb, num_tiles = _choose_batch_tile(b, n, jnp.dtype(x2.dtype).itemsize)
    b_pad = tb * num_tiles
    if b_pad != b:
        pad = ((0, b_pad - b), (0, 0))
        x2 = jnp.pad(x2, pad)   # zero rows -> cov=0, std=0 -> r = 0 (finite, dropped)
        y2 = jnp.pad(y2, pad)

    out = pl.pallas_call(
        _pearson_kernel,
        out_shape=jax.ShapeDtypeStruct((1, b_pad), jnp.float32),
        grid=(num_tiles,),
        in_specs=[
            pl.BlockSpec((tb, n), lambda i: (i, 0)),   # x tile
            pl.BlockSpec((tb, n), lambda i: (i, 0)),   # y tile
        ],
        out_specs=pl.BlockSpec((1, tb), lambda i: (0, i)),  # lane-dense result row
        compiler_params=pltpu.CompilerParams(
            dimension_semantics=("parallel",),          # megacore sharding on v7x
            vmem_limit_bytes=32 * 1024 * 1024,
        ),
    )(x2, y2)

    return out[0, :b].reshape(batch_shape).astype(out_dtype)


if __name__ == "__main__":
    key = jax.random.PRNGKey(0)
    kx, ky = jax.random.split(key)

    # (*batch_dims, N) with the reduction dim last: batch=(2, 4), N=128.
    x = jax.random.normal(kx, (2, 4, 128), dtype=jnp.float32)
    # Make y correlated with x so the result is meaningful.
    y = 0.7 * x + 0.3 * jax.random.normal(ky, (2, 4, 128), dtype=jnp.float32)

    loss = pearson_correlation_loss(x, y, dim=-1, seed=0)
    loss = jax.block_until_ready(loss)

    assert loss.shape == (2, 4)
    assert bool(jnp.all(jnp.isfinite(loss)))
    # Strong positive correlation -> negative-Pearson loss should be negative.
    assert bool(jnp.all(loss < 0.0))
    print("KERNEL_OK")
</pallas_src>

<mosaic_0001>
module attributes {stable_mosaic.version = 11 : i64} {
  func.func @_pearson_kernel(%arg0: i32, %arg1: memref<8x128xf32, #tpu.memory_space<vmem>>, %arg2: memref<8x128xf32, #tpu.memory_space<vmem>>, %arg3: memref<1x8xf32, #tpu.memory_space<vmem>>) attributes {dimension_semantics = [#tpu.dimension_semantics<parallel>], iteration_bounds = array<i64: 1>, scalar_prefetch = 0 : i64, scratch_operands = 0 : i64, tpu.core_type = #tpu.core_type<tc>, window_params = [{transform_indices = @transform_0, window_bounds = array<i64: 8, 128>}, {transform_indices = @transform_1, window_bounds = array<i64: 8, 128>}, {transform_indices = @transform_2, window_bounds = array<i64: 1, 8>}]} {
    %c0 = arith.constant 0 : index
    %c0_0 = arith.constant 0 : index
    %0 = vector.load %arg1[%c0, %c0_0] : memref<8x128xf32, #tpu.memory_space<vmem>>, vector<8x128xf32>
    %c0_1 = arith.constant 0 : index
    %c0_2 = arith.constant 0 : index
    %1 = vector.load %arg2[%c0_1, %c0_2] : memref<8x128xf32, #tpu.memory_space<vmem>>, vector<8x128xf32>
    %cst = arith.constant dense<0.000000e+00> : vector<8xf32>
    %2 = vector.multi_reduction <add>, %0, %cst [1] : vector<8x128xf32> to vector<8xf32>
    %3 = vector.shape_cast %2 : vector<8xf32> to vector<8x1xf32>
    %cst_3 = arith.constant 1.280000e+02 : f32
    %4 = vector.broadcast %cst_3 : f32 to vector<8x1xf32>
    %5 = arith.divf %3, %4 : vector<8x1xf32>
    %cst_4 = arith.constant dense<0.000000e+00> : vector<8xf32>
    %6 = vector.multi_reduction <add>, %1, %cst_4 [1] : vector<8x128xf32> to vector<8xf32>
    %7 = vector.shape_cast %6 : vector<8xf32> to vector<8x1xf32>
    %cst_5 = arith.constant 1.280000e+02 : f32
    %8 = vector.broadcast %cst_5 : f32 to vector<8x1xf32>
    %9 = arith.divf %7, %8 : vector<8x1xf32>
    %10 = vector.broadcast %5 : vector<8x1xf32> to vector<8x128xf32>
    %11 = arith.subf %0, %10 : vector<8x128xf32>
    %12 = vector.broadcast %9 : vector<8x1xf32> to vector<8x128xf32>
    %13 = arith.subf %1, %12 : vector<8x128xf32>
    %14 = arith.mulf %11, %13 : vector<8x128xf32>
    %cst_6 = arith.constant dense<0.000000e+00> : vector<8xf32>
    %15 = vector.multi_reduction <add>, %14, %cst_6 [1] : vector<8x128xf32> to vector<8xf32>
    %cst_7 = arith.constant 1.280000e+02 : f32
    %16 = vector.broadcast %cst_7 : f32 to vector<8xf32>
    %17 = arith.divf %15, %16 : vector<8xf32>
    %18 = arith.mulf %11, %11 : vector<8x128xf32>
    %cst_8 = arith.constant dense<0.000000e+00> : vector<8xf32>
    %19 = vector.multi_reduction <add>, %18, %cst_8 [1] : vector<8x128xf32> to vector<8xf32>
    %cst_9 = arith.constant 1.280000e+02 : f32
    %20 = vector.broadcast %cst_9 : f32 to vector<8xf32>
    %21 = arith.divf %19, %20 : vector<8xf32>
    %22 = math.sqrt %21 : vector<8xf32>
    %23 = arith.mulf %13, %13 : vector<8x128xf32>
    %cst_10 = arith.constant dense<0.000000e+00> : vector<8xf32>
    %24 = vector.multi_reduction <add>, %23, %cst_10 [1] : vector<8x128xf32> to vector<8xf32>
    %cst_11 = arith.constant 1.280000e+02 : f32
    %25 = vector.broadcast %cst_11 : f32 to vector<8xf32>
    %26 = arith.divf %24, %25 : vector<8xf32>
    %27 = math.sqrt %26 : vector<8xf32>
    %28 = arith.mulf %22, %27 : vector<8xf32>
    %cst_12 = arith.constant 1.000000e-03 : f32
    %29 = vector.broadcast %cst_12 : f32 to vector<8xf32>
    %30 = arith.addf %28, %29 : vector<8xf32>
    %31 = arith.divf %17, %30 : vector<8xf32>
    %cst_13 = arith.constant 0.000000e+00 : f32
    %32 = vector.broadcast %cst_13 : f32 to vector<8xf32>
    %33 = arith.subf %32, %31 : vector<8xf32>
    %34 = vector.shape_cast %33 : vector<8xf32> to vector<1x8xf32>
    %c0_14 = arith.constant 0 : index
    %c0_15 = arith.constant 0 : index
    %35 = vector.load %arg3[%c0_14, %c0_15] : memref<1x8xf32, #tpu.memory_space<vmem>>, vector<1x8xf32>
    tpu.vector_store %arg3[%c0_14, %c0_15], %34 {strides = array<i32>} : memref<1x8xf32, #tpu.memory_space<vmem>>, vector<1x8xf32>,
    return
  }
  func.func @transform_0(%arg0: i32) -> (i32, i32) {
    %c0_i32 = arith.constant 0 : i32
    %c0_i32_0 = arith.constant 0 : i32
    return %arg0, %c0_i32 : i32, i32
  }
  func.func @transform_1(%arg0: i32) -> (i32, i32) {
    %c0_i32 = arith.constant 0 : i32
    %c0_i32_0 = arith.constant 0 : i32
    return %arg0, %c0_i32 : i32, i32
  }
  func.func @transform_2(%arg0: i32) -> (i32, i32) {
    %c0_i32 = arith.constant 0 : i32
    %c0_i32_0 = arith.constant 0 : i32
    return %c0_i32, %arg0 : i32, i32
  }
}

</mosaic_0001>

<llo_original>
// kernel: tpu_custom_call.1
$region0: #{tpu_custom_call.1}
  #allocation0 [shape = 'u32[]', space=smem, size = 0x4, offset = 0x4, fixed_abs, tag = 'smem constant byte address 0x4 - core index']
  #allocation1 [shape = 'u32[144,128]{1,0:T(1,128)}', space=vmem, size = 0x12000, scoped, tag = 'internal scratch']
  %s0 = inlined_call_operand.hbm [shape: f32[8,128], index: 0, kind: input, shape index: {}]
  %s1 = inlined_call_operand.hbm [shape: f32[8,128], index: 1, kind: input, shape index: {}]
  %s2 = inlined_call_operand.hbm [shape: f32[1,8], index: 2, kind: output, shape index: {}]
  %s3 = sld [smem:[#allocation0]]
  $region26: #{tpu_custom_call.1} parent=0
    _
  %s5 = ssub.s32 1, %s3
  %s6 = scalar_select 0, %s5, %s3
  $region1: #{tpu_custom_call.1} parent=0
    #allocation2 [shape = 'u8[4096]{0}', space=vmem, size = 0x1000, scoped, tag = 'input window, operand 0, single buffered']
    #allocation3 [shape = 's32[1]{0}', space=sflag, size = 0x4, scoped, tag = 'scoped memory for tpu_custom_call.1']
    #allocation4 [shape = 's32[1]{0}', space=sflag, size = 0x4, scoped, tag = 'scoped memory for tpu_custom_call.1']
    #allocation5 [shape = 'u8[4096]{0}', space=vmem, size = 0x1000, scoped, tag = 'input window, operand 1, single buffered']
    #allocation6 [shape = 's32[1]{0}', space=sflag, size = 0x4, scoped, tag = 'scoped memory for tpu_custom_call.1']
    #allocation7 [shape = 'u8[512]{0}', space=vmem, size = 0x400, scoped, tag = 'output window, operand 0, single buffered']
    %7 = vsyncpa [#allocation3], 0
    %8 = vsyncpa [#allocation6], 0
    %9 = vsyncpa [#allocation4], 0
    // Predicated region
    $region2: #{tpu_custom_call.1} parent=1 // pred_check
      _
    $region3: #{tpu_custom_call.1} parent=1 // pred_check_branch
      %11 = sbr.rel (0) target = $region5
    $region4: #{tpu_custom_call.1} parent=1 // pred_region
      %s13 = ssub.s32 128, 128
      %14 = vsyncadd [#allocation3], %s13
      %s16 = sshll.u32 [#allocation2], 4
      %s17 = int_to_ptr.vmem [resolvable:$true] %s16
      %19 = dma.hbm_to_vmem [thread:$0]  %s0, 128, %s17, [#allocation3]
    $region5: #{tpu_custom_call.1} parent=1 // pred_fallthru
      _
    // Predicated region
    $region6: #{tpu_custom_call.1} parent=1 // pred_check
      _
    $region7: #{tpu_custom_call.1} parent=1 // pred_check_branch
      %21 = sbr.rel (0) target = $region9
    $region8: #{tpu_custom_call.1} parent=1 // pred_region
      %s23 = ssub.s32 128, 128
      %24 = vsyncadd [#allocation6], %s23
      %s26 = sshll.u32 [#allocation5], 4
      %s27 = int_to_ptr.vmem [resolvable:$true] %s26
      %29 = dma.hbm_to_vmem [thread:$0]  %s1, 128, %s27, [#allocation6]
    $region9: #{tpu_custom_call.1} parent=1 // pred_fallthru
      _
    // Predicated region
    $region10: #{tpu_custom_call.1} parent=1 // pred_check
      _
    $region11: #{tpu_custom_call.1} parent=1 // pred_check_branch
      %31 = sbr.rel (0) target = $region13
    $region12: #{tpu_custom_call.1} parent=1 // pred_region
      %32 = dma.done [#allocation3], 128
    $region13: #{tpu_custom_call.1} parent=1 // pred_fallthru
      _
    // Predicated region
    $region14: #{tpu_custom_call.1} parent=1 // pred_check
      _
    $region15: #{tpu_custom_call.1} parent=1 // pred_check_branch
      %34 = sbr.rel (0) target = $region17
    $region16: #{tpu_custom_call.1} parent=1 // pred_region
      %35 = dma.done [#allocation6], 128
    $region17: #{tpu_custom_call.1} parent=1 // pred_fallthru
      _
    %v36 = vld [vmem:[#allocation2] sm:$0xff]
    %v37 = vld [vmem:[#allocation5] sm:$0xff]
    %38 = vadd.xlane.f32.xlu0 %v36
    %v39 = vpop.xlane.xlu0 %38
    %v40 = vrcp.pop 128.0
    %v41 = vmul.f32 %v39, %v40
    %42 = vadd.xlane.f32.xlu0 %v37
    %v43 = vpop.xlane.xlu0 %42
    %v44 = vmul.f32 %v43, %v40
    %v45 = vsub.f32 %v36, %v41
    %v46 = vsub.f32 %v37, %v44
    %v47 = vmul.f32 %v45, %v46
    %48 = vadd.xlane.f32.xlu0 %v47
    %v49 = vpop.xlane.xlu0 %48
    %v50 = vmul.f32 %v49, %v40
    %v51 = vmul.f32 %v45, %v45
    %52 = vadd.xlane.f32.xlu0 %v51
    %v53 = vpop.xlane.xlu0 %52
    %v54 = vmul.f32 %v53, %v40
    %v55 = vrsqrt.pop %v54
    %v56 = vmul.f32 %v54, %v55
    %vm57 = vcmp.eq.f32.partialorder %v54, inf
    %v58 = vsel %vm57, %v54, %v56
    %vm59 = vcmp.eq.f32.partialorder %v54, 0.0
    %v60 = vand.u32 %v54, 2147483648
    %v61 = vsel %vm59, %v60, %v58
    %v62 = vmul.f32 %v46, %v46
    %63 = vadd.xlane.f32.xlu0 %v62
    %v64 = vpop.xlane.xlu0 %63
    %v65 = vmul.f32 %v64, %v40
    %v66 = vrsqrt.pop %v65
    %v67 = vmul.f32 %v65, %v66
    %vm68 = vcmp.eq.f32.partialorder %v65, inf
    %v69 = vsel %vm68, %v65, %v67
    %vm70 = vcmp.eq.f32.partialorder %v65, 0.0
    %v71 = vand.u32 %v65, 2147483648
    %v72 = vsel %vm70, %v71, %v69
    %v73 = vmul.f32 %v61, %v72
    %v74 = vadd.f32 %v73, 0.001
    %v75 = vrcp.pop %v74
    %v76 = vmul.f32 %v50, %v75
    %v77 = vsub.f32 0.0, %v76
    %v79 = vlaneseq
    %v80 = vand.u32 %v79, 127
    %v81 = vlaneseq
    %v82 = vshrl.u32 %v81, 7
    %v83 = vsub.s32 %v80, %v82
    %v84 = vrot.slane %v77, %v83
    %vm86 = vcmask 57344
    %87 = vst.msk [vmem:[#allocation7] sm:$0x1] %vm86, %v84
    // Predicated region
    $region18: #{tpu_custom_call.1} parent=1 // pred_check
      _
    $region19: #{tpu_custom_call.1} parent=1 // pred_check_branch
      %89 = sbr.rel (0) target = $region21
    $region20: #{tpu_custom_call.1} parent=1 // pred_region
      %s91 = ssub.s32 16, 16
      %92 = vsyncadd [#allocation4], %s91
      %s94 = sshll.u32 [#allocation7], 4
      %s95 = int_to_ptr.vmem [resolvable:$true] %s94
      %97 = dma.vmem_to_hbm [thread:$0]  %s95, 16, %s2, [#allocation4]
    $region21: #{tpu_custom_call.1} parent=1 // pred_fallthru
      _
    // Predicated region
    $region22: #{tpu_custom_call.1} parent=1 // pred_check
      _
    $region23: #{tpu_custom_call.1} parent=1 // pred_check_branch
      %99 = sbr.rel (0) target = $region25
    $region24: #{tpu_custom_call.1} parent=1 // pred_region
      %100 = dma.done [#allocation4], 16
    $region25: #{tpu_custom_call.1} parent=1 // pred_fallthru
      _
    %101 = vsyncpa [#allocation3], 1
    %102 = vsyncpa [#allocation6], 1
    %103 = vsyncpa [#allocation4], 1

</llo_original>
